<compile_context>
chip_gen: v7x
topology: tpu7x:2x2x1
jax: 0.10.0
libtpu: 0.0.40
codegen_flags: <defaults>
</compile_context>

<pallas_src>
import jax
import jax.numpy as jnp
from jax.experimental import pallas as pl
from jax.experimental.pallas import tpu as pltpu


def _conv1x1_kernel(x_ref, w_ref, b_ref, o_ref):
    # [tile_m, K] @ [K, Nc] on the MXU (bf16 operands, f32 accumulate) + bias.
    acc = jnp.dot(x_ref[...], w_ref[...], preferred_element_type=jnp.float32)
    o_ref[...] = (acc + b_ref[...]).astype(o_ref.dtype)


def _round_up(x, m):
    return ((x + m - 1) // m) * m


def conv2d_1x1(x_nchw, weight, bias, *, tile_m=1024):
    """x_nchw: [N, C_in, H, W]; weight: [C_out, C_in, 1, 1]; bias: [C_out]."""
    N, C_in, H, W = x_nchw.shape
    C_out = weight.shape[0]
    M = N * H * W

    # NCHW -> [M, K]. When H == W == 1, NCHW is already row-major [M, K];
    # skip the transpose entirely (the op is launch-bound at that shape).
    if H == 1 and W == 1:
        x_rows = x_nchw.reshape(M, C_in)
    else:
        x_rows = jnp.transpose(x_nchw, (0, 2, 3, 1)).reshape(M, C_in)

    # bf16 operands, f32 accumulation in the kernel.
    x_rows = x_rows.astype(jnp.bfloat16)
    w_mat = weight.reshape(C_out, C_in).T.astype(jnp.bfloat16)   # [K, Nc]
    b_row = bias.reshape(1, C_out).astype(jnp.float32)           # [1, Nc]

    # Tile over M; no explicit pad copy -- the partial last block is handled
    # by Pallas (out-of-bounds output rows are never written back).  Tile is
    # small enough for v7x's 64 MiB VMEM even when double-buffered.
    tile_m = min(tile_m, _round_up(max(M, 1), 16))
    num_tiles = pl.cdiv(M, tile_m)

    out_rows = pl.pallas_call(
        _conv1x1_kernel,
        out_shape=jax.ShapeDtypeStruct((M, C_out), x_nchw.dtype),
        grid=(num_tiles,),
        in_specs=[
            pl.BlockSpec((tile_m, C_in), lambda i: (i, 0)),   # X tile (pipelined)
            pl.BlockSpec((C_in, C_out), lambda i: (0, 0)),    # W: VMEM-resident
            pl.BlockSpec((1, C_out), lambda i: (0, 0)),       # bias: VMEM-resident
        ],
        out_specs=pl.BlockSpec((tile_m, C_out), lambda i: (i, 0)),
        compiler_params=pltpu.CompilerParams(
            dimension_semantics=("parallel",)),
    )(x_rows, w_mat, b_row)

    # [M, C_out] -> NCHW
    if H == 1 and W == 1:
        return out_rows.reshape(N, C_out, 1, 1)
    return jnp.transpose(out_rows.reshape(N, H, W, C_out), (0, 3, 1, 2))


def _ref_conv1x1(x_nchw, weight, bias, *, bf16):
    """Plain-JAX reference (optionally with the same bf16 operand cast)."""
    N, C_in, H, W = x_nchw.shape
    C_out = weight.shape[0]
    x_rows = jnp.transpose(x_nchw, (0, 2, 3, 1)).reshape(-1, C_in)
    w_mat = weight.reshape(C_out, C_in).T
    if bf16:
        x_rows = x_rows.astype(jnp.bfloat16)
        w_mat = w_mat.astype(jnp.bfloat16)
    out = jnp.dot(x_rows, w_mat, preferred_element_type=jnp.float32) + bias
    out = out.reshape(N, H, W, C_out).astype(x_nchw.dtype)
    return jnp.transpose(out, (0, 3, 1, 2))


if __name__ == "__main__":
    key = jax.random.PRNGKey(0)
    k_x, k_w, k_b, k_x2 = jax.random.split(key, 4)

    # Module spec: Conv2d(576, 144, kernel_size=(1, 1)), input [1, 576, 1, 1].
    fan_in = 576
    bound = 1.0 / (fan_in ** 0.5)
    weight = jax.random.uniform(k_w, (144, 576, 1, 1), jnp.float32, -bound, bound)
    bias = jax.random.uniform(k_b, (144,), jnp.float32, -bound, bound)

    # Primary (benchmarked) shape.
    x = jax.random.normal(k_x, (1, 576, 1, 1), dtype=jnp.float32)
    out = conv2d_1x1(x, weight, bias)
    jax.block_until_ready(out)
    assert out.shape == (1, 144, 1, 1), out.shape
    assert jnp.allclose(out, _ref_conv1x1(x, weight, bias, bf16=True),
                        atol=1e-4, rtol=1e-4)
    assert jnp.allclose(out, _ref_conv1x1(x, weight, bias, bf16=False),
                        atol=3e-2, rtol=3e-2)

    # Secondary shape exercising the tiled multi-block path (M = 2*24*24 = 1152).
    x2 = jax.random.normal(k_x2, (2, 576, 24, 24), dtype=jnp.float32)
    out2 = conv2d_1x1(x2, weight, bias)
    jax.block_until_ready(out2)
    assert out2.shape == (2, 144, 24, 24), out2.shape
    assert jnp.allclose(out2, _ref_conv1x1(x2, weight, bias, bf16=True),
                        atol=1e-4, rtol=1e-4)

    print("KERNEL_OK")
</pallas_src>

<mosaic_0001>
module attributes {stable_mosaic.version = 11 : i64} {
  func.func @_conv1x1_kernel(%arg0: i32, %arg1: memref<16x576xbf16, #tpu.memory_space<vmem>>, %arg2: memref<576x144xbf16, #tpu.memory_space<vmem>>, %arg3: memref<1x144xf32, #tpu.memory_space<vmem>>, %arg4: memref<16x144xf32, #tpu.memory_space<vmem>>) attributes {dimension_semantics = [#tpu.dimension_semantics<parallel>], iteration_bounds = array<i64: 1>, scalar_prefetch = 0 : i64, scratch_operands = 0 : i64, tpu.core_type = #tpu.core_type<tc>, window_params = [{transform_indices = @transform_0, window_bounds = array<i64: 16, 576>}, {pipeline_mode = #tpu.pipeline_mode<synchronous>, transform_indices = @transform_1, window_bounds = array<i64: 576, 144>}, {pipeline_mode = #tpu.pipeline_mode<synchronous>, transform_indices = @transform_2, window_bounds = array<i64: 1, 144>}, {transform_indices = @transform_3, window_bounds = array<i64: 16, 144>}]} {
    %c0 = arith.constant 0 : index
    %c0_0 = arith.constant 0 : index
    %0 = vector.load %arg1[%c0, %c0_0] : memref<16x576xbf16, #tpu.memory_space<vmem>>, vector<16x576xbf16>
    %c0_1 = arith.constant 0 : index
    %c0_2 = arith.constant 0 : index
    %1 = vector.load %arg2[%c0_1, %c0_2] : memref<576x144xbf16, #tpu.memory_space<vmem>>, vector<576x144xbf16>
    %cst = arith.constant dense<0.000000e+00> : vector<16x144xf32>
    %2 = tpu.matmul %0, %1, %cst {dimension_numbers = #tpu.dot_dimension_numbers<[1], [0], [0], [1], [0, 0, 1, 1], [], []>} : vector<16x576xbf16>, vector<576x144xbf16>, vector<16x144xf32> -> vector<16x144xf32>
    %c0_3 = arith.constant 0 : index
    %c0_4 = arith.constant 0 : index
    %3 = vector.load %arg3[%c0_3, %c0_4] : memref<1x144xf32, #tpu.memory_space<vmem>>, vector<1x144xf32>
    %4 = vector.broadcast %3 : vector<1x144xf32> to vector<16x144xf32>
    %5 = arith.addf %2, %4 : vector<16x144xf32>
    %c0_5 = arith.constant 0 : index
    %c0_6 = arith.constant 0 : index
    %6 = vector.load %arg4[%c0_5, %c0_6] : memref<16x144xf32, #tpu.memory_space<vmem>>, vector<16x144xf32>
    tpu.vector_store %arg4[%c0_5, %c0_6], %5 {strides = array<i32>} : memref<16x144xf32, #tpu.memory_space<vmem>>, vector<16x144xf32>,
    return
  }
  func.func @transform_0(%arg0: i32) -> (i32, i32) {
    %c0_i32 = arith.constant 0 : i32
    %c0_i32_0 = arith.constant 0 : i32
    return %arg0, %c0_i32 : i32, i32
  }
  func.func @transform_1(%arg0: i32) -> (i32, i32) {
    %c0_i32 = arith.constant 0 : i32
    %c0_i32_0 = arith.constant 0 : i32
    %c0_i32_1 = arith.constant 0 : i32
    return %c0_i32, %c0_i32_0 : i32, i32
  }
  func.func @transform_2(%arg0: i32) -> (i32, i32) {
    %c0_i32 = arith.constant 0 : i32
    %c0_i32_0 = arith.constant 0 : i32
    %c0_i32_1 = arith.constant 0 : i32
    return %c0_i32, %c0_i32_0 : i32, i32
  }
  func.func @transform_3(%arg0: i32) -> (i32, i32) {
    %c0_i32 = arith.constant 0 : i32
    %c0_i32_0 = arith.constant 0 : i32
    return %arg0, %c0_i32 : i32, i32
  }
}

</mosaic_0001>

<llo_original>
// kernel: tpu_custom_call.1
$region0: #{tpu_custom_call.1}
  #allocation0 [shape = 'u32[]', space=smem, size = 0x4, offset = 0x4, fixed_abs, tag = 'smem constant byte address 0x4 - core index']
  #allocation1 [shape = 'u32[144,128]{1,0:T(1,128)}', space=vmem, size = 0x12000, scoped, tag = 'internal scratch']
  %s0 = inlined_call_operand.vmem [shape: bf16[1,576], index: 0, kind: input, shape index: {}]
  %s1 = inlined_call_operand.vmem [shape: bf16[576,144], index: 1, kind: input, shape index: {}]
  %s2 = inlined_call_operand.vmem [shape: f32[1,144], index: 2, kind: input, shape index: {}]
  %s3 = inlined_call_operand.hbm [shape: f32[1,144], index: 3, kind: output, shape index: {}]
  %s4 = sld [smem:[#allocation0]]
  $region22: #{tpu_custom_call.1} parent=0
    _
  %s6 = ssub.s32 1, %s4
  %s7 = scalar_select 0, %s6, %s4
  $region1: #{tpu_custom_call.1} parent=0
    #allocation2 [shape = 'u8[16384]{0}', space=vmem, size = 0x4000, scoped, tag = 'output window, operand 0, single buffered']
    #allocation3 [shape = 's32[1]{0}', space=sflag, size = 0x4, scoped, tag = 'scoped memory for tpu_custom_call.1']
    %8 = vsyncpa [#allocation3], 0
    // Predicated region
    $region2: #{tpu_custom_call.1} parent=1 // pred_check
      _
    $region3: #{tpu_custom_call.1} parent=1 // pred_check_branch
      %10 = sbr.rel (0) target = $region5
    $region4: #{tpu_custom_call.1} parent=1 // pred_region
      _
    $region5: #{tpu_custom_call.1} parent=1 // pred_fallthru
      _
    // Predicated region
    $region6: #{tpu_custom_call.1} parent=1 // pred_check
      _
    $region7: #{tpu_custom_call.1} parent=1 // pred_check_branch
      %12 = sbr.rel (0) target = $region9
    $region8: #{tpu_custom_call.1} parent=1 // pred_region
      _
    $region9: #{tpu_custom_call.1} parent=1 // pred_fallthru
      _
    // Predicated region
    $region10: #{tpu_custom_call.1} parent=1 // pred_check
      _
    $region11: #{tpu_custom_call.1} parent=1 // pred_check_branch
      %14 = sbr.rel (0) target = $region13
    $region12: #{tpu_custom_call.1} parent=1 // pred_region
      _
    $region13: #{tpu_custom_call.1} parent=1 // pred_fallthru
      _
    %v16 = vld [vmem:[%s0] sm:$0x1f]
    %v17 = vld [vmem:[%s0 + $0x5] sm:$0x1f]
    %v18 = vld [vmem:[%s0 + $0xa] sm:$0x1f]
    %v19 = vld [vmem:[%s0 + $0xf] sm:$0x1f]
    %v20 = vld [vmem:[%s0 + $0x14] sm:$0x1f]
    %v21 = vld [vmem:[%s0 + $0x19] sm:$0x1f]
    %v22 = vld [vmem:[%s0 + $0x1e] sm:$0x1f]
    %v23 = vld [vmem:[%s0 + $0x23] sm:$0x1f]
    %v24 = vld [vmem:[%s1] sm:$0xff]
    %v25 = vld [vmem:[%s1 + $0x8] sm:$0xff]
    %v26 = vld [vmem:[%s1 + $0x10] sm:$0xff]
    %v27 = vld [vmem:[%s1 + $0x18] sm:$0xff]
    %v28 = vld [vmem:[%s1 + $0x20] sm:$0xff]
    %v29 = vld [vmem:[%s1 + $0x28] sm:$0xff]
    %v30 = vld [vmem:[%s1 + $0x30] sm:$0xff]
    %v31 = vld [vmem:[%s1 + $0x38] sm:$0xff]
    %v32 = vld [vmem:[%s1 + $0x40] sm:$0xff]
    %v33 = vld [vmem:[%s1 + $0x48] sm:$0xff]
    %v34 = vld [vmem:[%s1 + $0x50] sm:$0xff]
    %v35 = vld [vmem:[%s1 + $0x58] sm:$0xff]
    %v36 = vld [vmem:[%s1 + $0x60] sm:$0xff]
    %v37 = vld [vmem:[%s1 + $0x68] sm:$0xff]
    %v38 = vld [vmem:[%s1 + $0x70] sm:$0xff]
    %v39 = vld [vmem:[%s1 + $0x78] sm:$0xff]
    %v40 = vld [vmem:[%s1 + $0x80] sm:$0xff]
    %v41 = vld [vmem:[%s1 + $0x88] sm:$0xff]
    %v42 = vld [vmem:[%s1 + $0x90] sm:$0xff]
    %v43 = vld [vmem:[%s1 + $0x98] sm:$0xff]
    %v44 = vld [vmem:[%s1 + $0xa0] sm:$0xff]
    %v45 = vld [vmem:[%s1 + $0xa8] sm:$0xff]
    %v46 = vld [vmem:[%s1 + $0xb0] sm:$0xff]
    %v47 = vld [vmem:[%s1 + $0xb8] sm:$0xff]
    %v48 = vld [vmem:[%s1 + $0xc0] sm:$0xff]
    %v49 = vld [vmem:[%s1 + $0xc8] sm:$0xff]
    %v50 = vld [vmem:[%s1 + $0xd0] sm:$0xff]
    %v51 = vld [vmem:[%s1 + $0xd8] sm:$0xff]
    %v52 = vld [vmem:[%s1 + $0xe0] sm:$0xff]
    %v53 = vld [vmem:[%s1 + $0xe8] sm:$0xff]
    %v54 = vld [vmem:[%s1 + $0xf0] sm:$0xff]
    %v55 = vld [vmem:[%s1 + $0xf8] sm:$0xff]
    %v56 = vld [vmem:[%s1 + $0x100] sm:$0xff]
    %v57 = vld [vmem:[%s1 + $0x108] sm:$0xff]
    %v58 = vld [vmem:[%s1 + $0x110] sm:$0xff]
    %v59 = vld [vmem:[%s1 + $0x118] sm:$0xff]
    %v60 = vld [vmem:[%s1 + $0x120] sm:$0xff]
    %v61 = vld [vmem:[%s1 + $0x128] sm:$0xff]
    %v62 = vld [vmem:[%s1 + $0x130] sm:$0xff]
    %v63 = vld [vmem:[%s1 + $0x138] sm:$0xff]
    %v64 = vld [vmem:[%s1 + $0x140] sm:$0xff]
    %v65 = vld [vmem:[%s1 + $0x148] sm:$0xff]
    %v66 = vld [vmem:[%s1 + $0x150] sm:$0xff]
    %v67 = vld [vmem:[%s1 + $0x158] sm:$0xff]
    %v68 = vld [vmem:[%s1 + $0x160] sm:$0xff]
    %v69 = vld [vmem:[%s1 + $0x168] sm:$0xff]
    %v70 = vld [vmem:[%s1 + $0x170] sm:$0xff]
    %v71 = vld [vmem:[%s1 + $0x178] sm:$0xff]
    %v72 = vld [vmem:[%s1 + $0x180] sm:$0xff]
    %v73 = vld [vmem:[%s1 + $0x188] sm:$0xff]
    %v74 = vld [vmem:[%s1 + $0x190] sm:$0xff]
    %v75 = vld [vmem:[%s1 + $0x198] sm:$0xff]
    %v76 = vld [vmem:[%s1 + $0x1a0] sm:$0xff]
    %v77 = vld [vmem:[%s1 + $0x1a8] sm:$0xff]
    %v78 = vld [vmem:[%s1 + $0x1b0] sm:$0xff]
    %v79 = vld [vmem:[%s1 + $0x1b8] sm:$0xff]
    %v80 = vld [vmem:[%s1 + $0x1c0] sm:$0xff]
    %v81 = vld [vmem:[%s1 + $0x1c8] sm:$0xff]
    %v82 = vld [vmem:[%s1 + $0x1d0] sm:$0xff]
    %v83 = vld [vmem:[%s1 + $0x1d8] sm:$0xff]
    %v84 = vld [vmem:[%s1 + $0x1e0] sm:$0xff]
    %v85 = vld [vmem:[%s1 + $0x1e8] sm:$0xff]
    %v86 = vld [vmem:[%s1 + $0x1f0] sm:$0xff]
    %v87 = vld [vmem:[%s1 + $0x1f8] sm:$0xff]
    %v88 = vld [vmem:[%s1 + $0x200] sm:$0xff]
    %v89 = vld [vmem:[%s1 + $0x208] sm:$0xff]
    %v90 = vld [vmem:[%s1 + $0x210] sm:$0xff]
    %v91 = vld [vmem:[%s1 + $0x218] sm:$0xff]
    %v92 = vld [vmem:[%s1 + $0x220] sm:$0xff]
    %v93 = vld [vmem:[%s1 + $0x228] sm:$0xff]
    %v94 = vld [vmem:[%s1 + $0x230] sm:$0xff]
    %v95 = vld [vmem:[%s1 + $0x238] sm:$0xff]
    %v96 = vld [vmem:[%s2] sm:$0x3]
    %v98 = vlaneseq
    %v99 = vshrl.u32 %v98, 7
    %v100 = vsub.s32 0, %v99
    %v101 = vrot.slane %v96, %v100
    %v102 = vlaneseq
    %v103 = vshrl.u32 %v102, 7
    %v104 = vsub.s32 1, %v103
    %v105 = vrot.slane %v96, %v104
    %v116 = vcombine.low %v16, %v17
    %v117 = vcombine.high %v16, %v17
    %v118 = vcombine.low %v18, %v19
    %v119 = vcombine.high %v18, %v19
    %v120 = vcombine.low %v20, %v21
    %v121 = vcombine.high %v20, %v21
    %v122 = vcombine.low %v22, %v23
    %v123 = vcombine.high %v22, %v23
    %v125 = vunpack.c.l.s4 1966171168
    %v126 = vunpack.c.0.s8 %v125
    %v127 = vlaneseq
    %v128 = vshrl.u32 %v127, 7
    %v129 = vsub.s32 %v126, %v128
    %v130 = vrot.slane %v116, %v129
    %v132 = vunpack.c.l.s4 1966171168
    %v133 = vunpack.c.0.s8 %v132
    %v134 = vlaneseq
    %v135 = vshrl.u32 %v134, 7
    %v136 = vsub.s32 %v133, %v135
    %v137 = vrot.slane %v117, %v136
    %v139 = vunpack.c.l.s4 1966171168
    %v140 = vunpack.c.0.s8 %v139
    %v141 = vlaneseq
    %v142 = vshrl.u32 %v141, 7
    %v143 = vsub.s32 %v140, %v142
    %v144 = vrot.slane %v118, %v143
    %v146 = vunpack.c.l.s4 1966171168
    %v147 = vunpack.c.0.s8 %v146
    %v148 = vlaneseq
    %v149 = vshrl.u32 %v148, 7
    %v150 = vsub.s32 %v147, %v149
    %v151 = vrot.slane %v119, %v150
    %v153 = vunpack.c.l.s4 1966171168
    %v154 = vunpack.c.0.s8 %v153
    %v155 = vlaneseq
    %v156 = vshrl.u32 %v155, 7
    %v157 = vsub.s32 %v154, %v156
    %v158 = vrot.slane %v120, %v157
    %v160 = vunpack.c.l.s4 1966171168
    %v161 = vunpack.c.0.s8 %v160
    %v162 = vlaneseq
    %v163 = vshrl.u32 %v162, 7
    %v164 = vsub.s32 %v161, %v163
    %v165 = vrot.slane %v121, %v164
    %v167 = vunpack.c.l.s4 1966171168
    %v168 = vunpack.c.0.s8 %v167
    %v169 = vlaneseq
    %v170 = vshrl.u32 %v169, 7
    %v171 = vsub.s32 %v168, %v170
    %v172 = vrot.slane %v122, %v171
    %v174 = vunpack.c.l.s4 1966171168
    %v175 = vunpack.c.0.s8 %v174
    %v176 = vlaneseq
    %v177 = vshrl.u32 %v176, 7
    %v178 = vsub.s32 %v175, %v177
    %v179 = vrot.slane %v123, %v178
    %v180 = vcombine.low %v130, %v144
    %v181 = vcombine.high %v130, %v144
    %v182 = vcombine.low %v137, %v151
    %v183 = vcombine.low %v158, %v172
    %v184 = vcombine.high %v158, %v172
    %v185 = vcombine.low %v165, %v179
    %v187 = vunpack.c.l.s4 1966171168
    %v188 = vunpack.c.0.s8 %v187
    %v189 = vlaneseq
    %v190 = vshrl.u32 %v189, 7
    %v191 = vsub.s32 %v188, %v190
    %v192 = vrot.slane %v180, %v191
    %v194 = vunpack.c.l.s4 1966171168
    %v195 = vunpack.c.0.s8 %v194
    %v196 = vlaneseq
    %v197 = vshrl.u32 %v196, 7
    %v198 = vsub.s32 %v195, %v197
    %v199 = vrot.slane %v182, %v198
    %v201 = vunpack.c.l.s4 1966171168
    %v202 = vunpack.c.0.s8 %v201
    %v203 = vlaneseq
    %v204 = vshrl.u32 %v203, 7
    %v205 = vsub.s32 %v202, %v204
    %v206 = vrot.slane %v181, %v205
    %v208 = vunpack.c.l.s4 1966171168
    %v209 = vunpack.c.0.s8 %v208
    %v210 = vlaneseq
    %v211 = vshrl.u32 %v210, 7
    %v212 = vsub.s32 %v209, %v211
    %v213 = vrot.slane %v183, %v212
    %v215 = vunpack.c.l.s4 1966171168
    %v216 = vunpack.c.0.s8 %v215
    %v217 = vlaneseq
    %v218 = vshrl.u32 %v217, 7
    %v219 = vsub.s32 %v216, %v218
    %v220 = vrot.slane %v185, %v219
    %v222 = vunpack.c.l.s4 1966171168
    %v223 = vunpack.c.0.s8 %v222
    %v224 = vlaneseq
    %v225 = vshrl.u32 %v224, 7
    %v226 = vsub.s32 %v223, %v225
    %v227 = vrot.slane %v184, %v226
    %v228 = vcombine.low %v192, %v213
    %v229 = vcombine.high %v192, %v213
    %v230 = vcombine.low %v199, %v220
    %v231 = vcombine.low %v206, %v227
    %v232 = vcombine.high %v206, %v227
    %v309 = vunpack.c.l.b16 %v24
    %v310 = vunpack.c.h.b16 %v24
    %v311 = vunpack.c.l.b16 %v25
    %v312 = vunpack.c.h.b16 %v25
    %v313 = vunpack.c.l.b16 %v26
    %v314 = vunpack.c.h.b16 %v26
    %v315 = vunpack.c.l.b16 %v27
    %v316 = vunpack.c.h.b16 %v27
    %v317 = vunpack.c.l.b16 %v28
    %v318 = vunpack.c.h.b16 %v28
    %v319 = vunpack.c.l.b16 %v29
    %v320 = vunpack.c.h.b16 %v29
    %v321 = vunpack.c.l.b16 %v30
    %v322 = vunpack.c.h.b16 %v30
    %v323 = vunpack.c.l.b16 %v31
    %v324 = vunpack.c.h.b16 %v31
    %v325 = vunpack.c.l.b16 %v32
    %v326 = vunpack.c.h.b16 %v32
    %v327 = vunpack.c.l.b16 %v33
    %v328 = vunpack.c.h.b16 %v33
    %v329 = vunpack.c.l.b16 %v34
    %v330 = vunpack.c.h.b16 %v34
    %v331 = vunpack.c.l.b16 %v35
    %v332 = vunpack.c.h.b16 %v35
    %v333 = vunpack.c.l.b16 %v36
    %v334 = vunpack.c.h.b16 %v36
    %v335 = vunpack.c.l.b16 %v37
    %v336 = vunpack.c.h.b16 %v37
    %v337 = vunpack.c.l.b16 %v38
    %v338 = vunpack.c.h.b16 %v38
    %v339 = vunpack.c.l.b16 %v39
    %v340 = vunpack.c.h.b16 %v39
    %v341 = vunpack.c.l.b16 %v40
    %v342 = vunpack.c.h.b16 %v40
    %v343 = vunpack.c.l.b16 %v41
    %v344 = vunpack.c.h.b16 %v41
    %v345 = vunpack.c.l.b16 %v42
    %v346 = vunpack.c.h.b16 %v42
    %v347 = vunpack.c.l.b16 %v43
    %v348 = vunpack.c.h.b16 %v43
    %v349 = vunpack.c.l.b16 %v44
    %v350 = vunpack.c.h.b16 %v44
    %v351 = vunpack.c.l.b16 %v45
    %v352 = vunpack.c.h.b16 %v45
    %v353 = vunpack.c.l.b16 %v46
    %v354 = vunpack.c.h.b16 %v46
    %v355 = vunpack.c.l.b16 %v47
    %v356 = vunpack.c.h.b16 %v47
    %v357 = vunpack.c.l.b16 %v48
    %v358 = vunpack.c.h.b16 %v48
    %v359 = vunpack.c.l.b16 %v49
    %v360 = vunpack.c.h.b16 %v49
    %v361 = vunpack.c.l.b16 %v50
    %v362 = vunpack.c.h.b16 %v50
    %v363 = vunpack.c.l.b16 %v51
    %v364 = vunpack.c.h.b16 %v51
    %v365 = vunpack.c.l.b16 %v52
    %v366 = vunpack.c.h.b16 %v52
    %v367 = vunpack.c.l.b16 %v53
    %v368 = vunpack.c.h.b16 %v53
    %v369 = vunpack.c.l.b16 %v54
    %v370 = vunpack.c.h.b16 %v54
    %v371 = vunpack.c.l.b16 %v55
    %v372 = vunpack.c.h.b16 %v55
    %v373 = vunpack.c.l.b16 %v56
    %v374 = vunpack.c.h.b16 %v56
    %v375 = vunpack.c.l.b16 %v57
    %v376 = vunpack.c.h.b16 %v57
    %v377 = vunpack.c.l.b16 %v58
    %v378 = vunpack.c.h.b16 %v58
    %v379 = vunpack.c.l.b16 %v59
    %v380 = vunpack.c.h.b16 %v59
    %v381 = vunpack.c.l.b16 %v60
    %v382 = vunpack.c.h.b16 %v60
    %v383 = vunpack.c.l.b16 %v61
    %v384 = vunpack.c.h.b16 %v61
    %v385 = vunpack.c.l.b16 %v62
    %v386 = vunpack.c.h.b16 %v62
    %v387 = vunpack.c.l.b16 %v63
    %v388 = vunpack.c.h.b16 %v63
    %v389 = vunpack.c.l.b16 %v64
    %v390 = vunpack.c.h.b16 %v64
    %v391 = vunpack.c.l.b16 %v65
    %v392 = vunpack.c.h.b16 %v65
    %v393 = vunpack.c.l.b16 %v66
    %v394 = vunpack.c.h.b16 %v66
    %v395 = vunpack.c.l.b16 %v67
    %v396 = vunpack.c.h.b16 %v67
    %v397 = vunpack.c.l.b16 %v68
    %v398 = vunpack.c.h.b16 %v68
    %v399 = vunpack.c.l.b16 %v69
    %v400 = vunpack.c.h.b16 %v69
    %v401 = vunpack.c.l.b16 %v70
    %v402 = vunpack.c.h.b16 %v70
    %v403 = vunpack.c.l.b16 %v71
    %v404 = vunpack.c.h.b16 %v71
    %v405 = vunpack.c.l.b16 %v72
    %v406 = vunpack.c.h.b16 %v72
    %v407 = vunpack.c.l.b16 %v73
    %v408 = vunpack.c.h.b16 %v73
    %v409 = vunpack.c.l.b16 %v74
    %v410 = vunpack.c.h.b16 %v74
    %v411 = vunpack.c.l.b16 %v75
    %v412 = vunpack.c.h.b16 %v75
    %v413 = vunpack.c.l.b16 %v76
    %v414 = vunpack.c.h.b16 %v76
    %v415 = vunpack.c.l.b16 %v77
    %v416 = vunpack.c.h.b16 %v77
    %v417 = vunpack.c.l.b16 %v78
    %v418 = vunpack.c.h.b16 %v78
    %v419 = vunpack.c.l.b16 %v79
    %v420 = vunpack.c.h.b16 %v79
    %v421 = vunpack.c.l.b16 %v80
    %v422 = vunpack.c.h.b16 %v80
    %v423 = vunpack.c.l.b16 %v81
    %v424 = vunpack.c.h.b16 %v81
    %v425 = vunpack.c.l.b16 %v82
    %v426 = vunpack.c.h.b16 %v82
    %v427 = vunpack.c.l.b16 %v83
    %v428 = vunpack.c.h.b16 %v83
    %v429 = vunpack.c.l.b16 %v84
    %v430 = vunpack.c.h.b16 %v84
    %v431 = vunpack.c.l.b16 %v85
    %v432 = vunpack.c.h.b16 %v85
    %v433 = vunpack.c.l.b16 %v86
    %v434 = vunpack.c.h.b16 %v86
    %v435 = vunpack.c.l.b16 %v87
    %v436 = vunpack.c.h.b16 %v87
    %v437 = vunpack.c.l.b16 %v88
    %v438 = vunpack.c.h.b16 %v88
    %v439 = vunpack.c.l.b16 %v89
    %v440 = vunpack.c.h.b16 %v89
    %v441 = vunpack.c.l.b16 %v90
    %v442 = vunpack.c.h.b16 %v90
    %v443 = vunpack.c.l.b16 %v91
    %v444 = vunpack.c.h.b16 %v91
    %v445 = vunpack.c.l.b16 %v92
    %v446 = vunpack.c.h.b16 %v92
    %v447 = vunpack.c.l.b16 %v93
    %v448 = vunpack.c.h.b16 %v93
    %v449 = vunpack.c.l.b16 %v94
    %v450 = vunpack.c.h.b16 %v94
    %v451 = vunpack.c.l.b16 %v95
    %v452 = vunpack.c.h.b16 %v95
    %v453 = vpack.c.b16 %v311, %v309
    %v454 = vpack.c.b16 %v312, %v310
    %v455 = vpack.c.b16 %v315, %v313
    %v456 = vpack.c.b16 %v316, %v314
    %v457 = vpack.c.b16 %v319, %v317
    %v458 = vpack.c.b16 %v320, %v318
    %v459 = vpack.c.b16 %v323, %v321
    %v460 = vpack.c.b16 %v324, %v322
    %v461 = vpack.c.b16 %v327, %v325
    %v462 = vpack.c.b16 %v328, %v326
    %v463 = vpack.c.b16 %v331, %v329
    %v464 = vpack.c.b16 %v332, %v330
    %v465 = vpack.c.b16 %v335, %v333
    %v466 = vpack.c.b16 %v336, %v334
    %v467 = vpack.c.b16 %v339, %v337
    %v468 = vpack.c.b16 %v340, %v338
    %v469 = vpack.c.b16 %v343, %v341
    %v470 = vpack.c.b16 %v344, %v342
    %v471 = vpack.c.b16 %v347, %v345
    %v472 = vpack.c.b16 %v348, %v346
    %v473 = vpack.c.b16 %v351, %v349
    %v474 = vpack.c.b16 %v352, %v350
    %v475 = vpack.c.b16 %v355, %v353
    %v476 = vpack.c.b16 %v356, %v354
    %v477 = vpack.c.b16 %v359, %v357
    %v478 = vpack.c.b16 %v360, %v358
    %v479 = vpack.c.b16 %v363, %v361
    %v480 = vpack.c.b16 %v364, %v362
    %v481 = vpack.c.b16 %v367, %v365
    %v482 = vpack.c.b16 %v368, %v366
    %v483 = vpack.c.b16 %v371, %v369
    %v484 = vpack.c.b16 %v372, %v370
    %v485 = vpack.c.b16 %v375, %v373
    %v486 = vpack.c.b16 %v376, %v374
    %v487 = vpack.c.b16 %v379, %v377
    %v488 = vpack.c.b16 %v380, %v378
    %v489 = vpack.c.b16 %v383, %v381
    %v490 = vpack.c.b16 %v384, %v382
    %v491 = vpack.c.b16 %v387, %v385
    %v492 = vpack.c.b16 %v388, %v386
    %v493 = vpack.c.b16 %v391, %v389
    %v494 = vpack.c.b16 %v392, %v390
    %v495 = vpack.c.b16 %v395, %v393
    %v496 = vpack.c.b16 %v396, %v394
    %v497 = vpack.c.b16 %v399, %v397
    %v498 = vpack.c.b16 %v400, %v398
    %v499 = vpack.c.b16 %v403, %v401
    %v500 = vpack.c.b16 %v404, %v402
    %v501 = vpack.c.b16 %v407, %v405
    %v502 = vpack.c.b16 %v408, %v406
    %v503 = vpack.c.b16 %v411, %v409
    %v504 = vpack.c.b16 %v412, %v410
    %v505 = vpack.c.b16 %v415, %v413
    %v506 = vpack.c.b16 %v416, %v414
    %v507 = vpack.c.b16 %v419, %v417
    %v508 = vpack.c.b16 %v420, %v418
    %v509 = vpack.c.b16 %v423, %v421
    %v510 = vpack.c.b16 %v424, %v422
    %v511 = vpack.c.b16 %v427, %v425
    %v512 = vpack.c.b16 %v428, %v426
    %v513 = vpack.c.b16 %v431, %v429
    %v514 = vpack.c.b16 %v432, %v430
    %v515 = vpack.c.b16 %v435, %v433
    %v516 = vpack.c.b16 %v436, %v434
    %v517 = vpack.c.b16 %v439, %v437
    %v518 = vpack.c.b16 %v440, %v438
    %v519 = vpack.c.b16 %v443, %v441
    %v520 = vpack.c.b16 %v444, %v442
    %v521 = vpack.c.b16 %v447, %v445
    %v522 = vpack.c.b16 %v448, %v446
    %v523 = vpack.c.b16 %v451, %v449
    %v524 = vpack.c.b16 %v452, %v450
    %vm597 = vcmask 523264
    %v599 = vsel %vm597, %v230, 0
    %601 = vmatprep.subr.bf16.mxu0 %v454
    %602 = vmatpush1.bf16.msra.mxu0 %v453
    %603 = vmatprep.subr.bf16.mxu0 %v456
    %604 = vmatpush1.bf16.msra.mxu0 %v455
    %605 = vmatprep.subr.bf16.mxu0 %v458
    %606 = vmatpush1.bf16.msra.mxu0 %v457
    %607 = vmatprep.subr.bf16.mxu0 %v460
    %608 = vmatpush1.bf16.msra.mxu0 %v459
    %609 = vmatprep.subr.bf16.mxu0 %v462
    %610 = vmatpush1.bf16.msra.mxu0 %v461
    %611 = vmatprep.subr.bf16.mxu0 %v464
    %612 = vmatpush1.bf16.msra.mxu0 %v463
    %613 = vmatprep.subr.bf16.mxu0 %v466
    %614 = vmatpush1.bf16.msra.mxu0 %v465
    %615 = vmatprep.subr.bf16.mxu0 %v468
    %616 = vmatpush1.bf16.msra.mxu0 %v467
    %617 = vmatprep.subr.bf16.mxu0 %v470
    %618 = vmatpush1.bf16.msra.mxu0 %v469
    %619 = vmatprep.subr.bf16.mxu0 %v472
    %620 = vmatpush1.bf16.msra.mxu0 %v471
    %621 = vmatprep.subr.bf16.mxu0 %v474
    %622 = vmatpush1.bf16.msra.mxu0 %v473
    %623 = vmatprep.subr.bf16.mxu0 %v476
    %624 = vmatpush1.bf16.msra.mxu0 %v475
    %625 = vmatprep.subr.bf16.mxu0 %v478
    %626 = vmatpush1.bf16.msra.mxu0 %v477
    %627 = vmatprep.subr.bf16.mxu0 %v480
    %628 = vmatpush1.bf16.msra.mxu0 %v479
    %629 = vmatprep.subr.bf16.mxu0 %v482
    %630 = vmatpush1.bf16.msra.mxu0 %v481
    %631 = vmatprep.subr.bf16.mxu0 %v484
    %632 = vmatpush1.bf16.msra.mxu0 %v483
    %633 = vmatprep.mubr.bf16.mxu0 %v231
    %634 = vmatmul.mubr.bf16.gmra.mrb[0].mxu0 %v228
    %v635 = vpop.f32.mrb[0].mxu0
    %v636 = vadd.f32 %v101, %v635
    %v637 = vpop.f32.mrb[0].mxu0
    %v638 = vadd.f32 %v105, %v637
    %v639 = vpop.f32.mrb[0].mxu0
    %v640 = vadd.f32 %v101, %v639
    %v641 = vpop.f32.mrb[0].mxu0
    %v642 = vadd.f32 %v105, %v641
    %643 = vdwg.mxu0
    %644 = vmatprep.subr.bf16.mxu0 %v486
    %645 = vmatpush1.bf16.msra.mxu0 %v485
    %646 = vmatprep.subr.bf16.mxu0 %v488
    %647 = vmatpush1.bf16.msra.mxu0 %v487
    %648 = vmatprep.subr.bf16.mxu0 %v490
    %649 = vmatpush1.bf16.msra.mxu0 %v489
    %650 = vmatprep.subr.bf16.mxu0 %v492
    %651 = vmatpush1.bf16.msra.mxu0 %v491
    %652 = vmatprep.subr.bf16.mxu0 %v494
    %653 = vmatpush1.bf16.msra.mxu0 %v493
    %654 = vmatprep.subr.bf16.mxu0 %v496
    %655 = vmatpush1.bf16.msra.mxu0 %v495
    %656 = vmatprep.subr.bf16.mxu0 %v498
    %657 = vmatpush1.bf16.msra.mxu0 %v497
    %658 = vmatprep.subr.bf16.mxu0 %v500
    %659 = vmatpush1.bf16.msra.mxu0 %v499
    %660 = vmatprep.subr.bf16.mxu0 %v502
    %661 = vmatpush1.bf16.msra.mxu0 %v501
    %662 = vmatprep.subr.bf16.mxu0 %v504
    %663 = vmatpush1.bf16.msra.mxu0 %v503
    %664 = vmatprep.subr.bf16.mxu0 %v506
    %665 = vmatpush1.bf16.msra.mxu0 %v505
    %666 = vmatprep.subr.bf16.mxu0 %v508
    %667 = vmatpush1.bf16.msra.mxu0 %v507
    %668 = vmatprep.subr.bf16.mxu0 %v510
    %669 = vmatpush1.bf16.msra.mxu0 %v509
    %670 = vmatprep.subr.bf16.mxu0 %v512
    %671 = vmatpush1.bf16.msra.mxu0 %v511
    %672 = vmatprep.subr.bf16.mxu0 %v514
    %673 = vmatpush1.bf16.msra.mxu0 %v513
    %674 = vmatprep.subr.bf16.mxu0 %v516
    %675 = vmatpush1.bf16.msra.mxu0 %v515
    %676 = vmatprep.mubr.bf16.mxu0 %v232
    %677 = vmatmul.mubr.bf16.gmra.mrb[0].mxu0 %v229
    %v678 = vpop.f32.mrb[0].mxu0
    %v679 = vadd.f32 %v636, %v678
    %v680 = vpop.f32.mrb[0].mxu0
    %v681 = vadd.f32 %v638, %v680
    %v682 = vpop.f32.mrb[0].mxu0
    %v683 = vadd.f32 %v640, %v682
    %v684 = vpop.f32.mrb[0].mxu0
    %v685 = vadd.f32 %v642, %v684
    %686 = vdwg.mxu0
    %687 = vmatprep.subr.bf16.mxu0 %v518
    %688 = vmatpush1.bf16.msra.mxu0 %v517
    %689 = vmatprep.subr.bf16.mxu0 %v520
    %690 = vmatpush1.bf16.msra.mxu0 %v519
    %691 = vmatprep.subr.bf16.mxu0 %v522
    %692 = vmatpush1.bf16.msra.mxu0 %v521
    %693 = vmatprep.subr.bf16.mxu0 %v524
    %694 = vmatpush1.bf16.msra.mxu0 %v523
    %695 = vmatprep.subr.bf16.mxu0 0
    %696 = vmatpush1.bf16.msra.mxu0 0
    %697 = vmatprep.subr.bf16.mxu0 0
    %698 = vmatpush1.bf16.msra.mxu0 0
    %699 = vmatprep.subr.bf16.mxu0 0
    %700 = vmatpush1.bf16.msra.mxu0 0
    %701 = vmatprep.subr.bf16.mxu0 0
    %702 = vmatpush1.bf16.msra.mxu0 0
    %703 = vmatprep.subr.bf16.mxu0 0
    %704 = vmatpush1.bf16.msra.mxu0 0
    %705 = vmatprep.subr.bf16.mxu0 0
    %706 = vmatpush1.bf16.msra.mxu0 0
    %707 = vmatprep.subr.bf16.mxu0 0
    %708 = vmatpush1.bf16.msra.mxu0 0
    %709 = vmatprep.subr.bf16.mxu0 0
    %710 = vmatpush1.bf16.msra.mxu0 0
    %711 = vmatprep.subr.bf16.mxu0 0
    %712 = vmatpush1.bf16.msra.mxu0 0
    %713 = vmatprep.subr.bf16.mxu0 0
    %714 = vmatpush1.bf16.msra.mxu0 0
    %715 = vmatprep.subr.bf16.mxu0 0
    %716 = vmatpush1.bf16.msra.mxu0 0
    %717 = vmatprep.subr.bf16.mxu0 0
    %718 = vmatpush1.bf16.msra.mxu0 0
    %719 = vmatprep.mubr.bf16.mxu0 0
    %720 = vmatmul.mubr.bf16.gmra.mrb[0].mxu0 %v599
    %v721 = vpop.f32.mrb[0].mxu0
    %v722 = vadd.f32 %v679, %v721
    %v723 = vpop.f32.mrb[0].mxu0
    %v724 = vadd.f32 %v681, %v723
    %v725 = vpop.f32.mrb[0].mxu0
    %v726 = vadd.f32 %v683, %v725
    %v727 = vpop.f32.mrb[0].mxu0
    %v728 = vadd.f32 %v685, %v727
    %729 = vdwg.mxu0
    %v734 = vcombine.low %v722, %v724
    %v735 = vcombine.high %v722, %v724
    %v737 = vunpack.c.l.s4 1966171168
    %v738 = vunpack.c.0.s8 %v737
    %v739 = vlaneseq
    %v740 = vshrl.u32 %v739, 7
    %v741 = vsub.s32 %v738, %v740
    %v742 = vrot.slane %v734, %v741
    %v744 = vunpack.c.l.s4 1966171168
    %v745 = vunpack.c.0.s8 %v744
    %v746 = vlaneseq
    %v747 = vshrl.u32 %v746, 7
    %v748 = vsub.s32 %v745, %v747
    %v749 = vrot.slane %v735, %v748
    %v750 = vcombine.high %v742, %v742
    %v751 = vcombine.high %v749, %v749
    %v753 = vunpack.c.l.s4 1966171168
    %v754 = vunpack.c.0.s8 %v753
    %v755 = vlaneseq
    %v756 = vshrl.u32 %v755, 7
    %v757 = vsub.s32 %v754, %v756
    %v758 = vrot.slane %v742, %v757
    %v760 = vunpack.c.l.s4 1966171168
    %v761 = vunpack.c.0.s8 %v760
    %v762 = vlaneseq
    %v763 = vshrl.u32 %v762, 7
    %v764 = vsub.s32 %v761, %v763
    %v765 = vrot.slane %v749, %v764
    %v767 = vunpack.c.l.s4 1966171168
    %v768 = vunpack.c.0.s8 %v767
    %v769 = vlaneseq
    %v770 = vshrl.u32 %v769, 7
    %v771 = vsub.s32 %v768, %v770
    %v772 = vrot.slane %v750, %v771
    %v774 = vunpack.c.l.s4 1966171168
    %v775 = vunpack.c.0.s8 %v774
    %v776 = vlaneseq
    %v777 = vshrl.u32 %v776, 7
    %v778 = vsub.s32 %v775, %v777
    %v779 = vrot.slane %v751, %v778
    %v780 = vcombine.high %v758, %v758
    %v781 = vcombine.high %v765, %v765
    %v782 = vcombine.high %v772, %v772
    %v783 = vcombine.high %v779, %v779
    %v784 = vcombine.low %v726, %v728
    %v785 = vcombine.high %v726, %v728
    %v787 = vunpack.c.l.s4 1966171168
    %v788 = vunpack.c.0.s8 %v787
    %v789 = vlaneseq
    %v790 = vshrl.u32 %v789, 7
    %v791 = vsub.s32 %v788, %v790
    %v792 = vrot.slane %v784, %v791
    %v794 = vunpack.c.l.s4 1966171168
    %v795 = vunpack.c.0.s8 %v794
    %v796 = vlaneseq
    %v797 = vshrl.u32 %v796, 7
    %v798 = vsub.s32 %v795, %v797
    %v799 = vrot.slane %v785, %v798
    %v800 = vcombine.high %v792, %v792
    %v801 = vcombine.high %v799, %v799
    %v803 = vunpack.c.l.s4 1966171168
    %v804 = vunpack.c.0.s8 %v803
    %v805 = vlaneseq
    %v806 = vshrl.u32 %v805, 7
    %v807 = vsub.s32 %v804, %v806
    %v808 = vrot.slane %v792, %v807
    %v810 = vunpack.c.l.s4 1966171168
    %v811 = vunpack.c.0.s8 %v810
    %v812 = vlaneseq
    %v813 = vshrl.u32 %v812, 7
    %v814 = vsub.s32 %v811, %v813
    %v815 = vrot.slane %v799, %v814
    %v817 = vunpack.c.l.s4 1966171168
    %v818 = vunpack.c.0.s8 %v817
    %v819 = vlaneseq
    %v820 = vshrl.u32 %v819, 7
    %v821 = vsub.s32 %v818, %v820
    %v822 = vrot.slane %v800, %v821
    %v824 = vunpack.c.l.s4 1966171168
    %v825 = vunpack.c.0.s8 %v824
    %v826 = vlaneseq
    %v827 = vshrl.u32 %v826, 7
    %v828 = vsub.s32 %v825, %v827
    %v829 = vrot.slane %v801, %v828
    %v830 = vcombine.high %v808, %v808
    %v831 = vcombine.high %v815, %v815
    %v832 = vcombine.high %v822, %v822
    %v833 = vcombine.high %v829, %v829
    %v850 = vlaneseq
    %vm851 = vcmp.ge.s32.totalorder %v850, 0
    %vm852 = vcmp.lt.s32.totalorder %v850, 144
    %vm853 = vmand %vm851, %vm852
    %854 = vst.msk [vmem:[#allocation2] sm:$0x3] %vm853, %v758
    %855 = vst.msk [vmem:[#allocation2 + $0x2] sm:$0x3] %vm853, %v772
    %856 = vst.msk [vmem:[#allocation2 + $0x4] sm:$0x3] %vm853, %v780
    %857 = vst.msk [vmem:[#allocation2 + $0x6] sm:$0x3] %vm853, %v782
    %858 = vst.msk [vmem:[#allocation2 + $0x8] sm:$0x3] %vm853, %v765
    %859 = vst.msk [vmem:[#allocation2 + $0xa] sm:$0x3] %vm853, %v779
    %860 = vst.msk [vmem:[#allocation2 + $0xc] sm:$0x3] %vm853, %v781
    %861 = vst.msk [vmem:[#allocation2 + $0xe] sm:$0x3] %vm853, %v783
    %862 = vst.msk [vmem:[#allocation2 + $0x10] sm:$0x3] %vm853, %v808
    %863 = vst.msk [vmem:[#allocation2 + $0x12] sm:$0x3] %vm853, %v822
    %864 = vst.msk [vmem:[#allocation2 + $0x14] sm:$0x3] %vm853, %v830
    %865 = vst.msk [vmem:[#allocation2 + $0x16] sm:$0x3] %vm853, %v832
    %866 = vst.msk [vmem:[#allocation2 + $0x18] sm:$0x3] %vm853, %v815
    %867 = vst.msk [vmem:[#allocation2 + $0x1a] sm:$0x3] %vm853, %v829
    %868 = vst.msk [vmem:[#allocation2 + $0x1c] sm:$0x3] %vm853, %v831
    %869 = vst.msk [vmem:[#allocation2 + $0x1e] sm:$0x3] %vm853, %v833
    // Predicated region
    $region14: #{tpu_custom_call.1} parent=1 // pred_check
      _
    $region15: #{tpu_custom_call.1} parent=1 // pred_check_branch
      %871 = sbr.rel (0) target = $region17
    $region16: #{tpu_custom_call.1} parent=1 // pred_region
      %s873 = ssub.s32 512, 32
      %874 = vsyncadd [#allocation3], %s873
      %s875 = sshll.u32 [#allocation2], 4
      %s876 = int_to_ptr.vmem [resolvable:$true] %s875
      %881 = dma.vmem_to_hbm [thread:$0]  %s876, 32, %s3, [#allocation3], 32, 32, 2
    $region17: #{tpu_custom_call.1} parent=1 // pred_fallthru
      _
    // Predicated region
    $region18: #{tpu_custom_call.1} parent=1 // pred_check
      _
    $region19: #{tpu_custom_call.1} parent=1 // pred_check_branch
      %883 = sbr.rel (0) target = $region21
    $region20: #{tpu_custom_call.1} parent=1 // pred_region
      %884 = dma.done [#allocation3], 512
    $region21: #{tpu_custom_call.1} parent=1 // pred_fallthru
      _
    %885 = vsyncpa [#allocation3], 1

</llo_original>
